<compile_context>
chip_gen: v7x
topology: tpu7x:2x2x1
jax: 0.10.0
libtpu: 0.0.40
codegen_flags: <defaults>
</compile_context>

<pallas_src>
import functools

import jax
import jax.numpy as jnp
from jax.experimental import pallas as pl
from jax.experimental.pallas import tpu as pltpu

HIDDEN = 128                 # per-head hidden width (PyTorch Linear(state_dim, 128))
FUSED_HIDDEN = 2 * HIDDEN    # policy || value first layers stacked
OUT_ROWS = 8                 # sublane-padded output rows: [logits(A) | value(1) | 0-pad]
LANE = 128


def _round_up(x: int, m: int) -> int:
    return (x + m - 1) // m * m


def actor_critic_kernel(x_ref, w1_ref, b1_ref, w2_ref, b2_ref, out_ref):
    # x: (S, TB)   w1: (256, S)   b1: (256, 1)   w2: (8, 256)   b2: (8, 1)
    # Fused first layer for both heads + single ReLU.
    h = jnp.dot(w1_ref[...], x_ref[...], preferred_element_type=jnp.float32)
    h = jnp.maximum(h + b1_ref[...], 0.0)                       # (256, TB)
    # Fused second layer: rows 0..A-1 = policy logits, row A = value, rest zero.
    out = jnp.dot(w2_ref[...], h, preferred_element_type=jnp.float32) + b2_ref[...]
    out_ref[...] = out.astype(out_ref.dtype)                    # (8, TB) lane-dense store


@functools.partial(jax.jit,
                   static_argnames=("action_dim", "block_b", "min_pallas_batch"))
def actor_critic_forward(obs, fused, *, action_dim: int, block_b: int = 1024,
                         min_pallas_batch: int = 0):
    """obs: (B, state_dim) f32. Returns (logits (B, action_dim), value (B,))."""
    B, S = obs.shape
    A = action_dim
    assert A + 1 <= OUT_ROWS

    if B < min_pallas_batch:
        # Tiny-batch fallback: XLA-fused GEMVs beat a pallas_call dominated by
        # launch overhead + weight DMA (review: dispatch policy for B <= ~64).
        h = jnp.maximum(obs @ fused["w1t"].T + fused["b1"].T, 0.0)
        out = h @ fused["w2t"].T + fused["b2"].T
        return out[:, :A], out[:, A]

    assert block_b % LANE == 0 and block_b >= LANE
    # Batch lives on the lane axis: tile is either the full (small) batch or a
    # multiple of 128 lanes; aim for >= 2 grid steps so v7x megacore shards it.
    if B <= LANE:
        tb = B
    else:
        tb = min(block_b, _round_up(pl.cdiv(B, 2), LANE))
    grid = (pl.cdiv(B, tb),)     # partial last block: OOB reads unused, writes discarded

    obs_t = obs.T                # (S, B): 16 B/sample extra traffic, saves 480 B/sample writeback
    w1t, b1, w2t, b2 = fused["w1t"], fused["b1"], fused["w2t"], fused["b2"]

    flops = 2 * B * (S * FUSED_HIDDEN + FUSED_HIDDEN * OUT_ROWS)
    bytes_accessed = 4 * (obs_t.size + w1t.size + b1.size + w2t.size + b2.size
                          + OUT_ROWS * B)

    out = pl.pallas_call(
        actor_critic_kernel,
        out_shape=jax.ShapeDtypeStruct((OUT_ROWS, B), jnp.float32),
        grid_spec=pltpu.PrefetchScalarGridSpec(
            num_scalar_prefetch=0,
            grid=grid,
            in_specs=[
                pl.BlockSpec((S, tb), lambda i: (0, i)),                   # obs tile (lane = batch)
                pl.BlockSpec((FUSED_HIDDEN, S), lambda i: (0, 0)),         # W1^T (resident)
                pl.BlockSpec((FUSED_HIDDEN, 1), lambda i: (0, 0)),         # b1   (resident)
                pl.BlockSpec((OUT_ROWS, FUSED_HIDDEN), lambda i: (0, 0)),  # W2^T (resident)
                pl.BlockSpec((OUT_ROWS, 1), lambda i: (0, 0)),             # b2   (resident)
            ],
            out_specs=pl.BlockSpec((OUT_ROWS, tb), lambda i: (0, i)),
        ),
        compiler_params=pltpu.CompilerParams(
            dimension_semantics=("parallel",),   # batch grid -> both TCs on v7x
        ),
        cost_estimate=pl.CostEstimate(
            flops=flops, transcendentals=0, bytes_accessed=bytes_accessed),
    )(obs_t, w1t, b1, w2t, b2)

    logits = out[:A, :].T        # (B, A)
    value = out[A, :]            # (B,)  == PyTorch .squeeze(-1)
    return logits, value


def init_params(key, state_dim, action_dim, hidden=HIDDEN):
    """PyTorch nn.Linear default init: U(-1/sqrt(fan_in), +1/sqrt(fan_in))."""
    ks = jax.random.split(key, 8)

    def linear(kw, kb, fan_in, fan_out):
        bound = 1.0 / jnp.sqrt(jnp.float32(fan_in))
        w = jax.random.uniform(kw, (fan_in, fan_out), jnp.float32, -bound, bound)
        b = jax.random.uniform(kb, (1, fan_out), jnp.float32, -bound, bound)
        return w, b

    w1p, b1p = linear(ks[0], ks[1], state_dim, hidden)
    w2p, b2p = linear(ks[2], ks[3], hidden, action_dim)
    w1v, b1v = linear(ks[4], ks[5], state_dim, hidden)
    w2v, b2v = linear(ks[6], ks[7], hidden, 1)
    return {
        "w1_pi": w1p, "b1_pi": b1p, "w2_pi": w2p, "b2_pi": b2p,
        "w1_v": w1v, "b1_v": b1v, "w2_v": w2v, "b2_v": b2v,
    }


def fuse_params(p, action_dim):
    """Build the fused, transposed weights the kernel consumes."""
    A = action_dim
    w1t = jnp.concatenate([p["w1_pi"], p["w1_v"]], axis=1).T          # (256, S)
    b1 = jnp.concatenate([p["b1_pi"], p["b1_v"]], axis=1).T           # (256, 1)
    w2t = jnp.zeros((OUT_ROWS, FUSED_HIDDEN), jnp.float32)
    w2t = w2t.at[:A, :HIDDEN].set(p["w2_pi"].T)                       # policy rows
    w2t = w2t.at[A, HIDDEN:].set(p["w2_v"][:, 0])                     # value row
    b2 = jnp.zeros((OUT_ROWS, 1), jnp.float32)
    b2 = b2.at[:A, 0].set(p["b2_pi"][0])
    b2 = b2.at[A, 0].set(p["b2_v"][0, 0])
    return {"w1t": w1t, "b1": b1, "w2t": w2t, "b2": b2}


def reference_forward(obs, p):
    h_pi = jnp.maximum(obs @ p["w1_pi"] + p["b1_pi"], 0.0)
    logits = h_pi @ p["w2_pi"] + p["b2_pi"]
    h_v = jnp.maximum(obs @ p["w1_v"] + p["b1_v"], 0.0)
    value = (h_v @ p["w2_v"] + p["b2_v"])[:, 0]
    return logits, value


if __name__ == "__main__":
    key = jax.random.PRNGKey(0)
    k_param, k_obs = jax.random.split(key)

    # CartPole-like small shapes: batch=8, state_dim=4, action_dim=2
    batch, state_dim, action_dim = 8, 4, 2
    params = init_params(k_param, state_dim, action_dim)
    fused = fuse_params(params, action_dim)
    obs = jax.random.normal(k_obs, (batch, state_dim), dtype=jnp.float32)

    logits, value = actor_critic_forward(obs, fused, action_dim=action_dim)
    jax.block_until_ready((logits, value))

    ref_logits, ref_value = reference_forward(obs, params)
    assert logits.shape == (batch, action_dim)
    assert value.shape == (batch,)
    assert jnp.allclose(logits, ref_logits, atol=1e-5, rtol=1e-5)
    assert jnp.allclose(value, ref_value, atol=1e-5, rtol=1e-5)

    # Larger, non-tile-multiple batches: exercise the cdiv grid (partial last
    # block) and the >=2-grid-step path (megacore sharding on v7x).
    for big_b in (300, 2500):
        big_obs = jax.random.normal(jax.random.PRNGKey(big_b), (big_b, state_dim),
                                    jnp.float32)
        big_logits, big_value = actor_critic_forward(big_obs, fused,
                                                     action_dim=action_dim)
        jax.block_until_ready((big_logits, big_value))
        rl, rv = reference_forward(big_obs, params)
        assert big_logits.shape == (big_b, action_dim)
        assert big_value.shape == (big_b,)
        assert jnp.allclose(big_logits, rl, atol=1e-5, rtol=1e-5)
        assert jnp.allclose(big_value, rv, atol=1e-5, rtol=1e-5)

    # TODO(synk): step()/act() sampling (Categorical) is host-side control logic,
    # intentionally not kernelized; only forward() is implemented in Pallas.
    print("KERNEL_OK")
</pallas_src>

<mosaic_0001>
module attributes {stable_mosaic.version = 11 : i64} {
  func.func @actor_critic_kernel(%arg0: i32, %arg1: memref<4x8xf32, #tpu.memory_space<vmem>>, %arg2: memref<256x4xf32, #tpu.memory_space<vmem>>, %arg3: memref<256x1xf32, #tpu.memory_space<vmem>>, %arg4: memref<8x256xf32, #tpu.memory_space<vmem>>, %arg5: memref<8x1xf32, #tpu.memory_space<vmem>>, %arg6: memref<8x8xf32, #tpu.memory_space<vmem>>) attributes {dimension_semantics = [#tpu.dimension_semantics<parallel>], iteration_bounds = array<i64: 1>, scalar_prefetch = 0 : i64, scratch_operands = 0 : i64, tpu.core_type = #tpu.core_type<tc>, window_params = [{transform_indices = @transform_0, window_bounds = array<i64: 4, 8>}, {pipeline_mode = #tpu.pipeline_mode<synchronous>, transform_indices = @transform_1, window_bounds = array<i64: 256, 4>}, {pipeline_mode = #tpu.pipeline_mode<synchronous>, transform_indices = @transform_2, window_bounds = array<i64: 256, 1>}, {pipeline_mode = #tpu.pipeline_mode<synchronous>, transform_indices = @transform_3, window_bounds = array<i64: 8, 256>}, {pipeline_mode = #tpu.pipeline_mode<synchronous>, transform_indices = @transform_4, window_bounds = array<i64: 8, 1>}, {transform_indices = @transform_5, window_bounds = array<i64: 8, 8>}]} {
    %c0 = arith.constant 0 : index
    %c0_0 = arith.constant 0 : index
    %0 = vector.load %arg2[%c0, %c0_0] : memref<256x4xf32, #tpu.memory_space<vmem>>, vector<256x4xf32>
    %c0_1 = arith.constant 0 : index
    %c0_2 = arith.constant 0 : index
    %1 = vector.load %arg1[%c0_1, %c0_2] : memref<4x8xf32, #tpu.memory_space<vmem>>, vector<4x8xf32>
    %cst = arith.constant dense<0.000000e+00> : vector<256x8xf32>
    %2 = tpu.matmul %0, %1, %cst {dimension_numbers = #tpu.dot_dimension_numbers<[1], [0], [0], [1], [0, 0, 1, 1], [], []>} : vector<256x4xf32>, vector<4x8xf32>, vector<256x8xf32> -> vector<256x8xf32>
    %c0_3 = arith.constant 0 : index
    %c0_4 = arith.constant 0 : index
    %3 = vector.load %arg3[%c0_3, %c0_4] : memref<256x1xf32, #tpu.memory_space<vmem>>, vector<256x1xf32>
    %4 = vector.broadcast %3 : vector<256x1xf32> to vector<256x8xf32>
    %5 = arith.addf %2, %4 : vector<256x8xf32>
    %cst_5 = arith.constant 0.000000e+00 : f32
    %6 = vector.broadcast %cst_5 : f32 to vector<256x8xf32>
    %7 = arith.maximumf %5, %6 : vector<256x8xf32>
    %c0_6 = arith.constant 0 : index
    %c0_7 = arith.constant 0 : index
    %8 = vector.load %arg4[%c0_6, %c0_7] : memref<8x256xf32, #tpu.memory_space<vmem>>, vector<8x256xf32>
    %cst_8 = arith.constant dense<0.000000e+00> : vector<8x8xf32>
    %9 = tpu.matmul %8, %7, %cst_8 {dimension_numbers = #tpu.dot_dimension_numbers<[1], [0], [0], [1], [0, 0, 1, 1], [], []>} : vector<8x256xf32>, vector<256x8xf32>, vector<8x8xf32> -> vector<8x8xf32>
    %c0_9 = arith.constant 0 : index
    %c0_10 = arith.constant 0 : index
    %10 = vector.load %arg5[%c0_9, %c0_10] : memref<8x1xf32, #tpu.memory_space<vmem>>, vector<8x1xf32>
    %11 = vector.broadcast %10 : vector<8x1xf32> to vector<8x8xf32>
    %12 = arith.addf %9, %11 : vector<8x8xf32>
    %c0_11 = arith.constant 0 : index
    %c0_12 = arith.constant 0 : index
    %13 = vector.load %arg6[%c0_11, %c0_12] : memref<8x8xf32, #tpu.memory_space<vmem>>, vector<8x8xf32>
    tpu.vector_store %arg6[%c0_11, %c0_12], %12 {strides = array<i32>} : memref<8x8xf32, #tpu.memory_space<vmem>>, vector<8x8xf32>,
    return
  }
  func.func @transform_0(%arg0: i32) -> (i32, i32) {
    %c0_i32 = arith.constant 0 : i32
    %c0_i32_0 = arith.constant 0 : i32
    return %c0_i32, %arg0 : i32, i32
  }
  func.func @transform_1(%arg0: i32) -> (i32, i32) {
    %c0_i32 = arith.constant 0 : i32
    %c0_i32_0 = arith.constant 0 : i32
    %c0_i32_1 = arith.constant 0 : i32
    return %c0_i32, %c0_i32_0 : i32, i32
  }
  func.func @transform_2(%arg0: i32) -> (i32, i32) {
    %c0_i32 = arith.constant 0 : i32
    %c0_i32_0 = arith.constant 0 : i32
    %c0_i32_1 = arith.constant 0 : i32
    return %c0_i32, %c0_i32_0 : i32, i32
  }
  func.func @transform_3(%arg0: i32) -> (i32, i32) {
    %c0_i32 = arith.constant 0 : i32
    %c0_i32_0 = arith.constant 0 : i32
    %c0_i32_1 = arith.constant 0 : i32
    return %c0_i32, %c0_i32_0 : i32, i32
  }
  func.func @transform_4(%arg0: i32) -> (i32, i32) {
    %c0_i32 = arith.constant 0 : i32
    %c0_i32_0 = arith.constant 0 : i32
    %c0_i32_1 = arith.constant 0 : i32
    return %c0_i32, %c0_i32_0 : i32, i32
  }
  func.func @transform_5(%arg0: i32) -> (i32, i32) {
    %c0_i32 = arith.constant 0 : i32
    %c0_i32_0 = arith.constant 0 : i32
    return %c0_i32, %arg0 : i32, i32
  }
}

</mosaic_0001>

<llo_original>
// kernel: actor_critic_forward.1
$region0: #{actor_critic_forward.1}
  #allocation0 [shape = 'u32[]', space=smem, size = 0x4, offset = 0x4, fixed_abs, tag = 'smem constant byte address 0x4 - core index']
  #allocation1 [shape = 'u32[144,128]{1,0:T(1,128)}', space=vmem, size = 0x12000, scoped, tag = 'internal scratch']
  %s0 = inlined_call_operand.vmem [shape: f32[4,8], index: 0, kind: input, shape index: {}]
  %s1 = inlined_call_operand.vmem [shape: f32[256,4], index: 1, kind: input, shape index: {}]
  %s2 = inlined_call_operand.vmem [shape: f32[256,1], index: 2, kind: input, shape index: {}]
  %s3 = inlined_call_operand.vmem [shape: f32[8,256], index: 3, kind: input, shape index: {}]
  %s4 = inlined_call_operand.vmem [shape: f32[8,1], index: 4, kind: input, shape index: {}]
  %s5 = inlined_call_operand.vmem [shape: f32[8,8], index: 5, kind: output, shape index: {}]
  %s6 = sld [smem:[#allocation0]]
  $region30: #{actor_critic_forward.1} parent=0
    _
  %s8 = ssub.s32 1, %s6
  %s9 = scalar_select 0, %s8, %s6
  // Predicated region
  $region2: #{actor_critic_forward.1} parent=0 // pred_check
    _
  $region3: #{actor_critic_forward.1} parent=0 // pred_check_branch
    %11 = sbr.rel (0) target = $region5
  $region4: #{actor_critic_forward.1} parent=0 // pred_region
    _
  $region5: #{actor_critic_forward.1} parent=0 // pred_fallthru
    _
  // Predicated region
  $region6: #{actor_critic_forward.1} parent=0 // pred_check
    _
  $region7: #{actor_critic_forward.1} parent=0 // pred_check_branch
    %13 = sbr.rel (0) target = $region9
  $region8: #{actor_critic_forward.1} parent=0 // pred_region
    _
  $region9: #{actor_critic_forward.1} parent=0 // pred_fallthru
    _
  // Predicated region
  $region10: #{actor_critic_forward.1} parent=0 // pred_check
    _
  $region11: #{actor_critic_forward.1} parent=0 // pred_check_branch
    %15 = sbr.rel (0) target = $region13
  $region12: #{actor_critic_forward.1} parent=0 // pred_region
    _
  $region13: #{actor_critic_forward.1} parent=0 // pred_fallthru
    _
  // Predicated region
  $region14: #{actor_critic_forward.1} parent=0 // pred_check
    _
  $region15: #{actor_critic_forward.1} parent=0 // pred_check_branch
    %17 = sbr.rel (0) target = $region17
  $region16: #{actor_critic_forward.1} parent=0 // pred_region
    _
  $region17: #{actor_critic_forward.1} parent=0 // pred_fallthru
    _
  // Predicated region
  $region18: #{actor_critic_forward.1} parent=0 // pred_check
    _
  $region19: #{actor_critic_forward.1} parent=0 // pred_check_branch
    %19 = sbr.rel (0) target = $region21
  $region20: #{actor_critic_forward.1} parent=0 // pred_region
    _
  $region21: #{actor_critic_forward.1} parent=0 // pred_fallthru
    _
  %v20 = vld [vmem:[%s1] sm:$0xff]
  %v21 = vld [vmem:[%s1 + $0x8] sm:$0xff]
  %v22 = vld [vmem:[%s1 + $0x10] sm:$0xff]
  %v23 = vld [vmem:[%s1 + $0x18] sm:$0xff]
  %v24 = vld [vmem:[%s1 + $0x20] sm:$0xff]
  %v25 = vld [vmem:[%s1 + $0x28] sm:$0xff]
  %v26 = vld [vmem:[%s1 + $0x30] sm:$0xff]
  %v27 = vld [vmem:[%s1 + $0x38] sm:$0xff]
  %v28 = vld [vmem:[%s1 + $0x40] sm:$0xff]
  %v29 = vld [vmem:[%s1 + $0x48] sm:$0xff]
  %v30 = vld [vmem:[%s1 + $0x50] sm:$0xff]
  %v31 = vld [vmem:[%s1 + $0x58] sm:$0xff]
  %v32 = vld [vmem:[%s1 + $0x60] sm:$0xff]
  %v33 = vld [vmem:[%s1 + $0x68] sm:$0xff]
  %v34 = vld [vmem:[%s1 + $0x70] sm:$0xff]
  %v35 = vld [vmem:[%s1 + $0x78] sm:$0xff]
  %v36 = vld [vmem:[%s1 + $0x80] sm:$0xff]
  %v37 = vld [vmem:[%s1 + $0x88] sm:$0xff]
  %v38 = vld [vmem:[%s1 + $0x90] sm:$0xff]
  %v39 = vld [vmem:[%s1 + $0x98] sm:$0xff]
  %v40 = vld [vmem:[%s1 + $0xa0] sm:$0xff]
  %v41 = vld [vmem:[%s1 + $0xa8] sm:$0xff]
  %v42 = vld [vmem:[%s1 + $0xb0] sm:$0xff]
  %v43 = vld [vmem:[%s1 + $0xb8] sm:$0xff]
  %v44 = vld [vmem:[%s1 + $0xc0] sm:$0xff]
  %v45 = vld [vmem:[%s1 + $0xc8] sm:$0xff]
  %v46 = vld [vmem:[%s1 + $0xd0] sm:$0xff]
  %v47 = vld [vmem:[%s1 + $0xd8] sm:$0xff]
  %v48 = vld [vmem:[%s1 + $0xe0] sm:$0xff]
  %v49 = vld [vmem:[%s1 + $0xe8] sm:$0xff]
  %v50 = vld [vmem:[%s1 + $0xf0] sm:$0xff]
  %v51 = vld [vmem:[%s1 + $0xf8] sm:$0xff]
  %v52 = vld [vmem:[%s0] sm:$0xf]
  %v53 = vld [vmem:[%s2] sm:$0xff]
  %v54 = vld [vmem:[%s2 + $0x8] sm:$0xff]
  %v55 = vld [vmem:[%s2 + $0x10] sm:$0xff]
  %v56 = vld [vmem:[%s2 + $0x18] sm:$0xff]
  %v57 = vld [vmem:[%s2 + $0x20] sm:$0xff]
  %v58 = vld [vmem:[%s2 + $0x28] sm:$0xff]
  %v59 = vld [vmem:[%s2 + $0x30] sm:$0xff]
  %v60 = vld [vmem:[%s2 + $0x38] sm:$0xff]
  %v61 = vld [vmem:[%s2 + $0x40] sm:$0xff]
  %v62 = vld [vmem:[%s2 + $0x48] sm:$0xff]
  %v63 = vld [vmem:[%s2 + $0x50] sm:$0xff]
  %v64 = vld [vmem:[%s2 + $0x58] sm:$0xff]
  %v65 = vld [vmem:[%s2 + $0x60] sm:$0xff]
  %v66 = vld [vmem:[%s2 + $0x68] sm:$0xff]
  %v67 = vld [vmem:[%s2 + $0x70] sm:$0xff]
  %v68 = vld [vmem:[%s2 + $0x78] sm:$0xff]
  %v69 = vld [vmem:[%s2 + $0x80] sm:$0xff]
  %v70 = vld [vmem:[%s2 + $0x88] sm:$0xff]
  %v71 = vld [vmem:[%s2 + $0x90] sm:$0xff]
  %v72 = vld [vmem:[%s2 + $0x98] sm:$0xff]
  %v73 = vld [vmem:[%s2 + $0xa0] sm:$0xff]
  %v74 = vld [vmem:[%s2 + $0xa8] sm:$0xff]
  %v75 = vld [vmem:[%s2 + $0xb0] sm:$0xff]
  %v76 = vld [vmem:[%s2 + $0xb8] sm:$0xff]
  %v77 = vld [vmem:[%s2 + $0xc0] sm:$0xff]
  %v78 = vld [vmem:[%s2 + $0xc8] sm:$0xff]
  %v79 = vld [vmem:[%s2 + $0xd0] sm:$0xff]
  %v80 = vld [vmem:[%s2 + $0xd8] sm:$0xff]
  %v81 = vld [vmem:[%s2 + $0xe0] sm:$0xff]
  %v82 = vld [vmem:[%s2 + $0xe8] sm:$0xff]
  %v83 = vld [vmem:[%s2 + $0xf0] sm:$0xff]
  %v84 = vld [vmem:[%s2 + $0xf8] sm:$0xff]
  %86 = vset.pattern.permute.xlu0 0
  %87 = vperm.xlu0 %86, %v53
  %v88 = vpop.permute.xlu0 %87
  %91 = vset.pattern.permute.xlu0 0
  %92 = vperm.xlu0 %91, %v54
  %v93 = vpop.permute.xlu0 %92
  %96 = vset.pattern.permute.xlu0 0
  %97 = vperm.xlu0 %96, %v55
  %v98 = vpop.permute.xlu0 %97
  %101 = vset.pattern.permute.xlu0 0
  %102 = vperm.xlu0 %101, %v56
  %v103 = vpop.permute.xlu0 %102
  %106 = vset.pattern.permute.xlu0 0
  %107 = vperm.xlu0 %106, %v57
  %v108 = vpop.permute.xlu0 %107
  %111 = vset.pattern.permute.xlu0 0
  %112 = vperm.xlu0 %111, %v58
  %v113 = vpop.permute.xlu0 %112
  %116 = vset.pattern.permute.xlu0 0
  %117 = vperm.xlu0 %116, %v59
  %v118 = vpop.permute.xlu0 %117
  %121 = vset.pattern.permute.xlu0 0
  %122 = vperm.xlu0 %121, %v60
  %v123 = vpop.permute.xlu0 %122
  %126 = vset.pattern.permute.xlu0 0
  %127 = vperm.xlu0 %126, %v61
  %v128 = vpop.permute.xlu0 %127
  %131 = vset.pattern.permute.xlu0 0
  %132 = vperm.xlu0 %131, %v62
  %v133 = vpop.permute.xlu0 %132
  %136 = vset.pattern.permute.xlu0 0
  %137 = vperm.xlu0 %136, %v63
  %v138 = vpop.permute.xlu0 %137
  %141 = vset.pattern.permute.xlu0 0
  %142 = vperm.xlu0 %141, %v64
  %v143 = vpop.permute.xlu0 %142
  %146 = vset.pattern.permute.xlu0 0
  %147 = vperm.xlu0 %146, %v65
  %v148 = vpop.permute.xlu0 %147
  %151 = vset.pattern.permute.xlu0 0
  %152 = vperm.xlu0 %151, %v66
  %v153 = vpop.permute.xlu0 %152
  %156 = vset.pattern.permute.xlu0 0
  %157 = vperm.xlu0 %156, %v67
  %v158 = vpop.permute.xlu0 %157
  %161 = vset.pattern.permute.xlu0 0
  %162 = vperm.xlu0 %161, %v68
  %v163 = vpop.permute.xlu0 %162
  %166 = vset.pattern.permute.xlu0 0
  %167 = vperm.xlu0 %166, %v69
  %v168 = vpop.permute.xlu0 %167
  %171 = vset.pattern.permute.xlu0 0
  %172 = vperm.xlu0 %171, %v70
  %v173 = vpop.permute.xlu0 %172
  %176 = vset.pattern.permute.xlu0 0
  %177 = vperm.xlu0 %176, %v71
  %v178 = vpop.permute.xlu0 %177
  %181 = vset.pattern.permute.xlu0 0
  %182 = vperm.xlu0 %181, %v72
  %v183 = vpop.permute.xlu0 %182
  %186 = vset.pattern.permute.xlu0 0
  %187 = vperm.xlu0 %186, %v73
  %v188 = vpop.permute.xlu0 %187
  %191 = vset.pattern.permute.xlu0 0
  %192 = vperm.xlu0 %191, %v74
  %v193 = vpop.permute.xlu0 %192
  %196 = vset.pattern.permute.xlu0 0
  %197 = vperm.xlu0 %196, %v75
  %v198 = vpop.permute.xlu0 %197
  %201 = vset.pattern.permute.xlu0 0
  %202 = vperm.xlu0 %201, %v76
  %v203 = vpop.permute.xlu0 %202
  %206 = vset.pattern.permute.xlu0 0
  %207 = vperm.xlu0 %206, %v77
  %v208 = vpop.permute.xlu0 %207
  %211 = vset.pattern.permute.xlu0 0
  %212 = vperm.xlu0 %211, %v78
  %v213 = vpop.permute.xlu0 %212
  %216 = vset.pattern.permute.xlu0 0
  %217 = vperm.xlu0 %216, %v79
  %v218 = vpop.permute.xlu0 %217
  %221 = vset.pattern.permute.xlu0 0
  %222 = vperm.xlu0 %221, %v80
  %v223 = vpop.permute.xlu0 %222
  %226 = vset.pattern.permute.xlu0 0
  %227 = vperm.xlu0 %226, %v81
  %v228 = vpop.permute.xlu0 %227
  %231 = vset.pattern.permute.xlu0 0
  %232 = vperm.xlu0 %231, %v82
  %v233 = vpop.permute.xlu0 %232
  %236 = vset.pattern.permute.xlu0 0
  %237 = vperm.xlu0 %236, %v83
  %v238 = vpop.permute.xlu0 %237
  %241 = vset.pattern.permute.xlu0 0
  %242 = vperm.xlu0 %241, %v84
  %v243 = vpop.permute.xlu0 %242
  %vm245 = vcmask 31744
  %v247 = vsel %vm245, %v20, 0
  %v250 = vsel %vm245, %v21, 0
  %v253 = vsel %vm245, %v22, 0
  %v256 = vsel %vm245, %v23, 0
  %v259 = vsel %vm245, %v24, 0
  %v262 = vsel %vm245, %v25, 0
  %v265 = vsel %vm245, %v26, 0
  %v268 = vsel %vm245, %v27, 0
  %v271 = vsel %vm245, %v28, 0
  %v274 = vsel %vm245, %v29, 0
  %v277 = vsel %vm245, %v30, 0
  %v280 = vsel %vm245, %v31, 0
  %v283 = vsel %vm245, %v32, 0
  %v286 = vsel %vm245, %v33, 0
  %v289 = vsel %vm245, %v34, 0
  %v292 = vsel %vm245, %v35, 0
  %v295 = vsel %vm245, %v36, 0
  %v298 = vsel %vm245, %v37, 0
  %v301 = vsel %vm245, %v38, 0
  %v304 = vsel %vm245, %v39, 0
  %v307 = vsel %vm245, %v40, 0
  %v310 = vsel %vm245, %v41, 0
  %v313 = vsel %vm245, %v42, 0
  %v316 = vsel %vm245, %v43, 0
  %v319 = vsel %vm245, %v44, 0
  %v322 = vsel %vm245, %v45, 0
  %v325 = vsel %vm245, %v46, 0
  %v328 = vsel %vm245, %v47, 0
  %v331 = vsel %vm245, %v48, 0
  %v334 = vsel %vm245, %v49, 0
  %v337 = vsel %vm245, %v50, 0
  %v340 = vsel %vm245, %v51, 0
  %vm342 = vcmask 1043456
  %v344 = vsel %vm342, %v52, 0
  %346 = vmatprep.subr.mxu0 0.0
  %347 = vmatpush1.msra.mxu0 %v344
  %348 = vmatprep.subr.mxu0 0.0
  %349 = vmatpush1.msra.mxu0 0.0
  %350 = vmatprep.subr.mxu0 0.0
  %351 = vmatpush1.msra.mxu0 0.0
  %352 = vmatprep.subr.mxu0 0.0
  %353 = vmatpush1.msra.mxu0 0.0
  %354 = vmatprep.subr.mxu0 0.0
  %355 = vmatpush1.msra.mxu0 0.0
  %356 = vmatprep.subr.mxu0 0.0
  %357 = vmatpush1.msra.mxu0 0.0
  %358 = vmatprep.subr.mxu0 0.0
  %359 = vmatpush1.msra.mxu0 0.0
  %360 = vmatprep.subr.mxu0 0.0
  %361 = vmatpush1.msra.mxu0 0.0
  %362 = vmatprep.subr.mxu0 0.0
  %363 = vmatpush1.msra.mxu0 0.0
  %364 = vmatprep.subr.mxu0 0.0
  %365 = vmatpush1.msra.mxu0 0.0
  %366 = vmatprep.subr.mxu0 0.0
  %367 = vmatpush1.msra.mxu0 0.0
  %368 = vmatprep.subr.mxu0 0.0
  %369 = vmatpush1.msra.mxu0 0.0
  %370 = vmatprep.subr.mxu0 0.0
  %371 = vmatpush1.msra.mxu0 0.0
  %372 = vmatprep.subr.mxu0 0.0
  %373 = vmatpush1.msra.mxu0 0.0
  %374 = vmatprep.subr.mxu0 0.0
  %375 = vmatpush1.msra.mxu0 0.0
  %376 = vmatprep.subr.mxu0 0.0
  %377 = vmatpush1.msra.mxu0 0.0
  %378 = vmatprep.subr.mxu0 0.0
  %379 = vmatpush1.msra.mxu0 0.0
  %380 = vmatprep.subr.mxu0 0.0
  %381 = vmatpush1.msra.mxu0 0.0
  %382 = vmatprep.subr.mxu0 0.0
  %383 = vmatpush1.msra.mxu0 0.0
  %384 = vmatprep.subr.mxu0 0.0
  %385 = vmatpush1.msra.mxu0 0.0
  %386 = vmatprep.subr.mxu0 0.0
  %387 = vmatpush1.msra.mxu0 0.0
  %388 = vmatprep.subr.mxu0 0.0
  %389 = vmatpush1.msra.mxu0 0.0
  %390 = vmatprep.subr.mxu0 0.0
  %391 = vmatpush1.msra.mxu0 0.0
  %392 = vmatprep.subr.mxu0 0.0
  %393 = vmatpush1.msra.mxu0 0.0
  %394 = vmatprep.subr.mxu0 0.0
  %395 = vmatpush1.msra.mxu0 0.0
  %396 = vmatprep.subr.mxu0 0.0
  %397 = vmatpush1.msra.mxu0 0.0
  %398 = vmatprep.subr.mxu0 0.0
  %399 = vmatpush1.msra.mxu0 0.0
  %400 = vmatprep.subr.mxu0 0.0
  %401 = vmatpush1.msra.mxu0 0.0
  %402 = vmatprep.subr.mxu0 0.0
  %403 = vmatpush1.msra.mxu0 0.0
  %404 = vmatprep.subr.mxu0 0.0
  %405 = vmatpush1.msra.mxu0 0.0
  %406 = vmatprep.subr.mxu0 0.0
  %407 = vmatpush1.msra.mxu0 0.0
  %408 = vmatprep.subr.mxu0 0.0
  %409 = vmatpush1.msra.mxu0 0.0
  %410 = vmatprep.mubr.f32.mxu0 0.0
  %411 = vmatmul.mubr.f32.gmra.mrb[0].mxu0 %v247
  %v412 = vpop.f32.mrb[0].mxu0
  %v413 = vadd.f32 %v88, %v412
  %v414 = vpop.f32.mrb[0].mxu0
  %415 = vmatprep.mubr.f32.mxu0 0.0
  %416 = vmatmul.mubr.f32.gmra.mrb[0].mxu0 %v250
  %v417 = vpop.f32.mrb[0].mxu0
  %v418 = vadd.f32 %v93, %v417
  %v419 = vpop.f32.mrb[0].mxu0
  %420 = vmatprep.mubr.f32.mxu0 0.0
  %421 = vmatmul.mubr.f32.gmra.mrb[0].mxu0 %v253
  %v422 = vpop.f32.mrb[0].mxu0
  %v423 = vadd.f32 %v98, %v422
  %v424 = vpop.f32.mrb[0].mxu0
  %425 = vmatprep.mubr.f32.mxu0 0.0
  %426 = vmatmul.mubr.f32.gmra.mrb[0].mxu0 %v256
  %v427 = vpop.f32.mrb[0].mxu0
  %v428 = vadd.f32 %v103, %v427
  %v429 = vpop.f32.mrb[0].mxu0
  %430 = vmatprep.mubr.f32.mxu0 0.0
  %431 = vmatmul.mubr.f32.gmra.mrb[0].mxu0 %v259
  %v432 = vpop.f32.mrb[0].mxu0
  %v433 = vadd.f32 %v108, %v432
  %v434 = vpop.f32.mrb[0].mxu0
  %435 = vmatprep.mubr.f32.mxu0 0.0
  %436 = vmatmul.mubr.f32.gmra.mrb[0].mxu0 %v262
  %v437 = vpop.f32.mrb[0].mxu0
  %v438 = vadd.f32 %v113, %v437
  %v439 = vpop.f32.mrb[0].mxu0
  %440 = vmatprep.mubr.f32.mxu0 0.0
  %441 = vmatmul.mubr.f32.gmra.mrb[0].mxu0 %v265
  %v442 = vpop.f32.mrb[0].mxu0
  %v443 = vadd.f32 %v118, %v442
  %v444 = vpop.f32.mrb[0].mxu0
  %445 = vmatprep.mubr.f32.mxu0 0.0
  %446 = vmatmul.mubr.f32.gmra.mrb[0].mxu0 %v268
  %v447 = vpop.f32.mrb[0].mxu0
  %v448 = vadd.f32 %v123, %v447
  %v449 = vpop.f32.mrb[0].mxu0
  %450 = vmatprep.mubr.f32.mxu0 0.0
  %451 = vmatmul.mubr.f32.gmra.mrb[0].mxu0 %v271
  %v452 = vpop.f32.mrb[0].mxu0
  %v453 = vadd.f32 %v128, %v452
  %v454 = vpop.f32.mrb[0].mxu0
  %455 = vmatprep.mubr.f32.mxu0 0.0
  %456 = vmatmul.mubr.f32.gmra.mrb[0].mxu0 %v274
  %v457 = vpop.f32.mrb[0].mxu0
  %v458 = vadd.f32 %v133, %v457
  %v459 = vpop.f32.mrb[0].mxu0
  %460 = vmatprep.mubr.f32.mxu0 0.0
  %461 = vmatmul.mubr.f32.gmra.mrb[0].mxu0 %v277
  %v462 = vpop.f32.mrb[0].mxu0
  %v463 = vadd.f32 %v138, %v462
  %v464 = vpop.f32.mrb[0].mxu0
  %465 = vmatprep.mubr.f32.mxu0 0.0
  %466 = vmatmul.mubr.f32.gmra.mrb[0].mxu0 %v280
  %v467 = vpop.f32.mrb[0].mxu0
  %v468 = vadd.f32 %v143, %v467
  %v469 = vpop.f32.mrb[0].mxu0
  %470 = vmatprep.mubr.f32.mxu0 0.0
  %471 = vmatmul.mubr.f32.gmra.mrb[0].mxu0 %v283
  %v472 = vpop.f32.mrb[0].mxu0
  %v473 = vadd.f32 %v148, %v472
  %v474 = vpop.f32.mrb[0].mxu0
  %475 = vmatprep.mubr.f32.mxu0 0.0
  %476 = vmatmul.mubr.f32.gmra.mrb[0].mxu0 %v286
  %v477 = vpop.f32.mrb[0].mxu0
  %v478 = vadd.f32 %v153, %v477
  %v479 = vpop.f32.mrb[0].mxu0
  %480 = vmatprep.mubr.f32.mxu0 0.0
  %481 = vmatmul.mubr.f32.gmra.mrb[0].mxu0 %v289
  %v482 = vpop.f32.mrb[0].mxu0
  %v483 = vadd.f32 %v158, %v482
  %v484 = vpop.f32.mrb[0].mxu0
  %485 = vmatprep.mubr.f32.mxu0 0.0
  %486 = vmatmul.mubr.f32.gmra.mrb[0].mxu0 %v292
  %v487 = vpop.f32.mrb[0].mxu0
  %v488 = vadd.f32 %v163, %v487
  %v489 = vpop.f32.mrb[0].mxu0
  %490 = vmatprep.mubr.f32.mxu0 0.0
  %491 = vmatmul.mubr.f32.gmra.mrb[0].mxu0 %v295
  %v492 = vpop.f32.mrb[0].mxu0
  %v493 = vadd.f32 %v168, %v492
  %v494 = vpop.f32.mrb[0].mxu0
  %495 = vmatprep.mubr.f32.mxu0 0.0
  %496 = vmatmul.mubr.f32.gmra.mrb[0].mxu0 %v298
  %v497 = vpop.f32.mrb[0].mxu0
  %v498 = vadd.f32 %v173, %v497
  %v499 = vpop.f32.mrb[0].mxu0
  %500 = vmatprep.mubr.f32.mxu0 0.0
  %501 = vmatmul.mubr.f32.gmra.mrb[0].mxu0 %v301
  %v502 = vpop.f32.mrb[0].mxu0
  %v503 = vadd.f32 %v178, %v502
  %v504 = vpop.f32.mrb[0].mxu0
  %505 = vmatprep.mubr.f32.mxu0 0.0
  %506 = vmatmul.mubr.f32.gmra.mrb[0].mxu0 %v304
  %v507 = vpop.f32.mrb[0].mxu0
  %v508 = vadd.f32 %v183, %v507
  %v509 = vpop.f32.mrb[0].mxu0
  %510 = vmatprep.mubr.f32.mxu0 0.0
  %511 = vmatmul.mubr.f32.gmra.mrb[0].mxu0 %v307
  %v512 = vpop.f32.mrb[0].mxu0
  %v513 = vadd.f32 %v188, %v512
  %v514 = vpop.f32.mrb[0].mxu0
  %515 = vmatprep.mubr.f32.mxu0 0.0
  %516 = vmatmul.mubr.f32.gmra.mrb[0].mxu0 %v310
  %v517 = vpop.f32.mrb[0].mxu0
  %v518 = vadd.f32 %v193, %v517
  %v519 = vpop.f32.mrb[0].mxu0
  %520 = vmatprep.mubr.f32.mxu0 0.0
  %521 = vmatmul.mubr.f32.gmra.mrb[0].mxu0 %v313
  %v522 = vpop.f32.mrb[0].mxu0
  %v523 = vadd.f32 %v198, %v522
  %v524 = vpop.f32.mrb[0].mxu0
  %525 = vmatprep.mubr.f32.mxu0 0.0
  %526 = vmatmul.mubr.f32.gmra.mrb[0].mxu0 %v316
  %v527 = vpop.f32.mrb[0].mxu0
  %v528 = vadd.f32 %v203, %v527
  %v529 = vpop.f32.mrb[0].mxu0
  %530 = vmatprep.mubr.f32.mxu0 0.0
  %531 = vmatmul.mubr.f32.gmra.mrb[0].mxu0 %v319
  %v532 = vpop.f32.mrb[0].mxu0
  %v533 = vadd.f32 %v208, %v532
  %v534 = vpop.f32.mrb[0].mxu0
  %535 = vmatprep.mubr.f32.mxu0 0.0
  %536 = vmatmul.mubr.f32.gmra.mrb[0].mxu0 %v322
  %v537 = vpop.f32.mrb[0].mxu0
  %v538 = vadd.f32 %v213, %v537
  %v539 = vpop.f32.mrb[0].mxu0
  %540 = vmatprep.mubr.f32.mxu0 0.0
  %541 = vmatmul.mubr.f32.gmra.mrb[0].mxu0 %v325
  %v542 = vpop.f32.mrb[0].mxu0
  %v543 = vadd.f32 %v218, %v542
  %v544 = vpop.f32.mrb[0].mxu0
  %545 = vmatprep.mubr.f32.mxu0 0.0
  %546 = vmatmul.mubr.f32.gmra.mrb[0].mxu0 %v328
  %v547 = vpop.f32.mrb[0].mxu0
  %v548 = vadd.f32 %v223, %v547
  %v549 = vpop.f32.mrb[0].mxu0
  %550 = vmatprep.mubr.f32.mxu0 0.0
  %551 = vmatmul.mubr.f32.gmra.mrb[0].mxu0 %v331
  %v552 = vpop.f32.mrb[0].mxu0
  %v553 = vadd.f32 %v228, %v552
  %v554 = vpop.f32.mrb[0].mxu0
  %555 = vmatprep.mubr.f32.mxu0 0.0
  %556 = vmatmul.mubr.f32.gmra.mrb[0].mxu0 %v334
  %v557 = vpop.f32.mrb[0].mxu0
  %v558 = vadd.f32 %v233, %v557
  %v559 = vpop.f32.mrb[0].mxu0
  %560 = vmatprep.mubr.f32.mxu0 0.0
  %561 = vmatmul.mubr.f32.gmra.mrb[0].mxu0 %v337
  %v562 = vpop.f32.mrb[0].mxu0
  %v563 = vadd.f32 %v238, %v562
  %v564 = vpop.f32.mrb[0].mxu0
  %565 = vmatprep.mubr.f32.mxu0 0.0
  %566 = vmatmul.mubr.f32.gmra.mrb[0].mxu0 %v340
  %v567 = vpop.f32.mrb[0].mxu0
  %v568 = vadd.f32 %v243, %v567
  %v569 = vpop.f32.mrb[0].mxu0
  %570 = vdwg.mxu0
  %v571 = vmax.f32 %v413, 0.0
  %v572 = vmax.f32 %v418, 0.0
  %v573 = vmax.f32 %v423, 0.0
  %v574 = vmax.f32 %v428, 0.0
  %v575 = vmax.f32 %v433, 0.0
  %v576 = vmax.f32 %v438, 0.0
  %v577 = vmax.f32 %v443, 0.0
  %v578 = vmax.f32 %v448, 0.0
  %v579 = vmax.f32 %v453, 0.0
  %v580 = vmax.f32 %v458, 0.0
  %v581 = vmax.f32 %v463, 0.0
  %v582 = vmax.f32 %v468, 0.0
  %v583 = vmax.f32 %v473, 0.0
  %v584 = vmax.f32 %v478, 0.0
  %v585 = vmax.f32 %v483, 0.0
  %v586 = vmax.f32 %v488, 0.0
  %v587 = vmax.f32 %v493, 0.0
  %v588 = vmax.f32 %v498, 0.0
  %v589 = vmax.f32 %v503, 0.0
  %v590 = vmax.f32 %v508, 0.0
  %v591 = vmax.f32 %v513, 0.0
  %v592 = vmax.f32 %v518, 0.0
  %v593 = vmax.f32 %v523, 0.0
  %v594 = vmax.f32 %v528, 0.0
  %v595 = vmax.f32 %v533, 0.0
  %v596 = vmax.f32 %v538, 0.0
  %v597 = vmax.f32 %v543, 0.0
  %v598 = vmax.f32 %v548, 0.0
  %v599 = vmax.f32 %v553, 0.0
  %v600 = vmax.f32 %v558, 0.0
  %v601 = vmax.f32 %v563, 0.0
  %v602 = vmax.f32 %v568, 0.0
  %v603 = vld [vmem:[%s3] sm:$0xff]
  %v604 = vld [vmem:[%s3 + $0x8] sm:$0xff]
  %v605 = vld [vmem:[%s4] sm:$0xff]
  %607 = vset.pattern.permute.xlu0 0
  %608 = vperm.xlu0 %607, %v605
  %v609 = vpop.permute.xlu0 %608
  %611 = vmatprep.subr.mxu0 0.0
  %612 = vmatpush1.msra.mxu0 %v571
  %613 = vmatprep.subr.mxu0 0.0
  %614 = vmatpush1.msra.mxu0 %v572
  %615 = vmatprep.subr.mxu0 0.0
  %616 = vmatpush1.msra.mxu0 %v573
  %617 = vmatprep.subr.mxu0 0.0
  %618 = vmatpush1.msra.mxu0 %v574
  %619 = vmatprep.subr.mxu0 0.0
  %620 = vmatpush1.msra.mxu0 %v575
  %621 = vmatprep.subr.mxu0 0.0
  %622 = vmatpush1.msra.mxu0 %v576
  %623 = vmatprep.subr.mxu0 0.0
  %624 = vmatpush1.msra.mxu0 %v577
  %625 = vmatprep.subr.mxu0 0.0
  %626 = vmatpush1.msra.mxu0 %v578
  %627 = vmatprep.subr.mxu0 0.0
  %628 = vmatpush1.msra.mxu0 %v579
  %629 = vmatprep.subr.mxu0 0.0
  %630 = vmatpush1.msra.mxu0 %v580
  %631 = vmatprep.subr.mxu0 0.0
  %632 = vmatpush1.msra.mxu0 %v581
  %633 = vmatprep.subr.mxu0 0.0
  %634 = vmatpush1.msra.mxu0 %v582
  %635 = vmatprep.subr.mxu0 0.0
  %636 = vmatpush1.msra.mxu0 %v583
  %637 = vmatprep.subr.mxu0 0.0
  %638 = vmatpush1.msra.mxu0 %v584
  %639 = vmatprep.subr.mxu0 0.0
  %640 = vmatpush1.msra.mxu0 %v585
  %641 = vmatprep.subr.mxu0 0.0
  %642 = vmatpush1.msra.mxu0 %v586
  %643 = vmatprep.subr.mxu0 0.0
  %644 = vmatpush1.msra.mxu0 %v587
  %645 = vmatprep.subr.mxu0 0.0
  %646 = vmatpush1.msra.mxu0 %v588
  %647 = vmatprep.subr.mxu0 0.0
  %648 = vmatpush1.msra.mxu0 %v589
  %649 = vmatprep.subr.mxu0 0.0
  %650 = vmatpush1.msra.mxu0 %v590
  %651 = vmatprep.subr.mxu0 0.0
  %652 = vmatpush1.msra.mxu0 %v591
  %653 = vmatprep.subr.mxu0 0.0
  %654 = vmatpush1.msra.mxu0 %v592
  %655 = vmatprep.subr.mxu0 0.0
  %656 = vmatpush1.msra.mxu0 %v593
  %657 = vmatprep.subr.mxu0 0.0
  %658 = vmatpush1.msra.mxu0 %v594
  %659 = vmatprep.subr.mxu0 0.0
  %660 = vmatpush1.msra.mxu0 %v595
  %661 = vmatprep.subr.mxu0 0.0
  %662 = vmatpush1.msra.mxu0 %v596
  %663 = vmatprep.subr.mxu0 0.0
  %664 = vmatpush1.msra.mxu0 %v597
  %665 = vmatprep.subr.mxu0 0.0
  %666 = vmatpush1.msra.mxu0 %v598
  %667 = vmatprep.subr.mxu0 0.0
  %668 = vmatpush1.msra.mxu0 %v599
  %669 = vmatprep.subr.mxu0 0.0
  %670 = vmatpush1.msra.mxu0 %v600
  %671 = vmatprep.subr.mxu0 0.0
  %672 = vmatpush1.msra.mxu0 %v601
  %673 = vmatprep.subr.mxu0 0.0
  %674 = vmatpush1.msra.mxu0 %v602
  %675 = vmatprep.mubr.f32.mxu0 %v604
  %676 = vmatmul.mubr.f32.gmra.mrb[0].mxu0 %v603
  %v677 = vpop.f32.mrb[0].mxu0
  %v678 = vadd.f32 %v609, %v677
  %v679 = vpop.f32.mrb[0].mxu0
  %680 = vdwg.mxu0
  %vm681 = vcmask 64512
  %682 = vst.msk [vmem:[%s5] sm:$0xff] %vm681, %v678
  // Predicated region
  $region22: #{actor_critic_forward.1} parent=0 // pred_check
    _
  $region23: #{actor_critic_forward.1} parent=0 // pred_check_branch
    %684 = sbr.rel (0) target = $region25
  $region24: #{actor_critic_forward.1} parent=0 // pred_region
    _
  $region25: #{actor_critic_forward.1} parent=0 // pred_fallthru
    _
  // Predicated region
  $region26: #{actor_critic_forward.1} parent=0 // pred_check
    _
  $region27: #{actor_critic_forward.1} parent=0 // pred_check_branch
    %686 = sbr.rel (0) target = $region29
  $region28: #{actor_critic_forward.1} parent=0 // pred_region
    _
  $region29: #{actor_critic_forward.1} parent=0 // pred_fallthru
    _

</llo_original>
